<compile_context>
chip_gen: v6e
topology: v6e:2x2x1
jax: 0.10.0
libtpu: 0.0.40
codegen_flags: <defaults>
</compile_context>

<pallas_src>
import jax
import jax.numpy as jnp
from jax.experimental import pallas as pl
from jax.experimental.pallas import tpu as pltpu


# --------------------------------------------------------------------------
# Kernel
# --------------------------------------------------------------------------
def _self_attention_kernel(x_ref, w_ref, b_ref, o_ref):
    B, S, E = x_ref.shape
    cd = x_ref.dtype                      # compute dtype (f32 or bf16)

    # Fused Q/K/V projection: one (B*S, E) @ (E, 3E) MXU matmul, f32 accum.
    x2d = x_ref[...].reshape(B * S, E)
    qkv = jnp.dot(x2d, w_ref[...], preferred_element_type=jnp.float32)
    qkv = qkv + b_ref[...]                # bias (1, 3E) broadcast, f32

    # 1/sqrt(E) is already folded into the Q weights/bias in fuse_qkv_params.
    q = qkv[:, :E].reshape(B, S, E).astype(cd)
    k = qkv[:, E:2 * E].reshape(B, S, E).astype(cd)
    v = qkv[:, 2 * E:].reshape(B, S, E).astype(cd)

    # Scores: batched Q @ K^T, f32 accumulation.
    # TODO(synk): check lower_as_mlir for a per-tile vxpose of K before
    #             scaling this to a KV-tiled (flash) form.
    scores = jnp.einsum("bqe,bke->bqk", q, k,
                        preferred_element_type=jnp.float32)   # (B, S, S) f32

    # Numerically-stable softmax over the last axis (exact divide — the
    # denominator is tiny, so approx reciprocal buys nothing here).
    m = jnp.max(scores, axis=-1, keepdims=True)
    p = jnp.exp(scores - m)
    denom = jnp.sum(p, axis=-1, keepdims=True)
    weights = (p / denom).astype(cd)

    # Output: (B, S, E)
    out = jnp.einsum("bqk,bke->bqe", weights, v,
                     preferred_element_type=jnp.float32)
    o_ref[...] = out.astype(o_ref.dtype)


# --------------------------------------------------------------------------
# Parameter fusion — call ONCE at setup time, reuse the result every forward.
# --------------------------------------------------------------------------
def fuse_qkv_params(wq, bq, wk, bk, wv, bv, *, compute_dtype=jnp.float32):
    """wq/wk/wv: (E, E) PyTorch nn.Linear weights (out, in); b*: (E,).

    Returns (w_qkv, b_qkv) with the 1/sqrt(E) attention scale folded into the
    Q columns.  w_qkv: (E, 3E) in compute_dtype, b_qkv: (1, 3E) f32.
    """
    E = wq.shape[0]
    scale = 1.0 / (E ** 0.5)
    w_qkv = jnp.concatenate([wq.T * scale, wk.T, wv.T], axis=1)        # (E, 3E)
    b_qkv = jnp.concatenate([bq * scale, bk, bv]).reshape(1, 3 * E)    # (1, 3E)
    return w_qkv.astype(compute_dtype), b_qkv.astype(jnp.float32)


def _vmem_limit_bytes(*arrays):
    need = sum(int(a.size) * a.dtype.itemsize for a in arrays)
    # Double-buffer + scratch headroom; clamp to a v7x-safe ceiling (64 MiB phys).
    return int(min(max(4 * need + (1 << 20), 4 << 20), 32 << 20))


# --------------------------------------------------------------------------
# Forward wrapper — one Pallas call, no per-call padding / slicing.
# --------------------------------------------------------------------------
def my_self_attention(x, w_qkv, b_qkv, *, compute_dtype=jnp.float32):
    """x: [B, S, E].  w_qkv/b_qkv from fuse_qkv_params (cached at setup)."""
    B, S, E = x.shape
    x_c = x.astype(compute_dtype)

    cost = pl.CostEstimate(
        flops=2 * B * S * E * 3 * E + 4 * B * S * S * E,
        transcendentals=B * S * S,
        bytes_accessed=(x_c.size * x_c.dtype.itemsize
                        + w_qkv.size * w_qkv.dtype.itemsize
                        + b_qkv.size * b_qkv.dtype.itemsize
                        + B * S * E * x.dtype.itemsize),
    )

    return pl.pallas_call(
        _self_attention_kernel,
        out_shape=jax.ShapeDtypeStruct((B, S, E), x.dtype),
        in_specs=[
            pl.BlockSpec(memory_space=pltpu.MemorySpace.VMEM),   # x  (B,S,E)
            pl.BlockSpec(memory_space=pltpu.MemorySpace.VMEM),   # W_qkv (E,3E)
            pl.BlockSpec(memory_space=pltpu.MemorySpace.VMEM),   # b_qkv (1,3E)
        ],
        out_specs=pl.BlockSpec(memory_space=pltpu.MemorySpace.VMEM),
        compiler_params=pltpu.CompilerParams(
            vmem_limit_bytes=_vmem_limit_bytes(x_c, w_qkv, b_qkv)),
        cost_estimate=cost,
    )(x_c, w_qkv, b_qkv)


# --------------------------------------------------------------------------
# Pure-JAX reference matching the PyTorch forward exactly.
# --------------------------------------------------------------------------
def _reference(x, wq, bq, wk, bk, wv, bv):
    E = x.shape[-1]
    Q = jnp.einsum("bse,oe->bso", x, wq) + bq
    K = jnp.einsum("bse,oe->bso", x, wk) + bk
    V = jnp.einsum("bse,oe->bso", x, wv) + bv
    scores = jnp.einsum("bqe,bke->bqk", Q, K) / (E ** 0.5)
    w = jax.nn.softmax(scores, axis=2)
    return jnp.einsum("bqk,bke->bqe", w, V)


if __name__ == "__main__":
    B, S, E = 2, 8, 32
    key = jax.random.PRNGKey(0)
    kx, kwq, kbq, kwk, kbk, kwv, kbv = jax.random.split(key, 7)

    x = jax.random.normal(kx, (B, S, E), dtype=jnp.float32)
    # "nn.Linear"-style params: weight (out, in), bias (out,)
    bound = 1.0 / (E ** 0.5)
    wq = jax.random.uniform(kwq, (E, E), jnp.float32, -bound, bound)
    bq = jax.random.uniform(kbq, (E,), jnp.float32, -bound, bound)
    wk = jax.random.uniform(kwk, (E, E), jnp.float32, -bound, bound)
    bk = jax.random.uniform(kbk, (E,), jnp.float32, -bound, bound)
    wv = jax.random.uniform(kwv, (E, E), jnp.float32, -bound, bound)
    bv = jax.random.uniform(kbv, (E,), jnp.float32, -bound, bound)

    # Fuse once at "module construction" time, reuse on every forward.
    w_qkv, b_qkv = fuse_qkv_params(wq, bq, wk, bk, wv, bv)

    out = my_self_attention(x, w_qkv, b_qkv)
    out = jax.block_until_ready(out)

    ref = _reference(x, wq, bq, wk, bk, wv, bv)
    assert out.shape == (B, S, E)
    assert jnp.allclose(out, ref, atol=1e-4, rtol=1e-4), (
        float(jnp.max(jnp.abs(out - ref))))
    print("KERNEL_OK")
</pallas_src>

<mosaic_0001>
module attributes {stable_mosaic.version = 11 : i64} {
  func.func @_self_attention_kernel(%arg0: memref<2x8x32xf32, #tpu.memory_space<vmem>>, %arg1: memref<32x96xf32, #tpu.memory_space<vmem>>, %arg2: memref<1x96xf32, #tpu.memory_space<vmem>>, %arg3: memref<2x8x32xf32, #tpu.memory_space<vmem>>) attributes {dimension_semantics = [], scalar_prefetch = 0 : i64, scratch_operands = 0 : i64, tpu.core_type = #tpu.core_type<tc>} {
    %c0 = arith.constant 0 : index
    %c0_0 = arith.constant 0 : index
    %c0_1 = arith.constant 0 : index
    %0 = vector.load %arg0[%c0, %c0_0, %c0_1] : memref<2x8x32xf32, #tpu.memory_space<vmem>>, vector<2x8x32xf32>
    %1 = vector.shape_cast %0 : vector<2x8x32xf32> to vector<16x32xf32>
    %c0_2 = arith.constant 0 : index
    %c0_3 = arith.constant 0 : index
    %2 = vector.load %arg1[%c0_2, %c0_3] : memref<32x96xf32, #tpu.memory_space<vmem>>, vector<32x96xf32>
    %cst = arith.constant dense<0.000000e+00> : vector<16x96xf32>
    %3 = tpu.matmul %1, %2, %cst {dimension_numbers = #tpu.dot_dimension_numbers<[1], [0], [0], [1], [0, 0, 1, 1], [], []>} : vector<16x32xf32>, vector<32x96xf32>, vector<16x96xf32> -> vector<16x96xf32>
    %c0_4 = arith.constant 0 : index
    %c0_5 = arith.constant 0 : index
    %4 = vector.load %arg2[%c0_4, %c0_5] : memref<1x96xf32, #tpu.memory_space<vmem>>, vector<1x96xf32>
    %5 = vector.broadcast %4 : vector<1x96xf32> to vector<16x96xf32>
    %6 = arith.addf %3, %5 : vector<16x96xf32>
    %7 = vector.extract_strided_slice %6 {offsets = [0, 0], sizes = [16, 32], strides = [1, 1]} : vector<16x96xf32> to vector<16x32xf32>
    %8 = vector.shape_cast %7 : vector<16x32xf32> to vector<2x8x32xf32>
    %9 = vector.extract_strided_slice %6 {offsets = [0, 32], sizes = [16, 32], strides = [1, 1]} : vector<16x96xf32> to vector<16x32xf32>
    %10 = vector.shape_cast %9 : vector<16x32xf32> to vector<2x8x32xf32>
    %11 = vector.extract_strided_slice %6 {offsets = [0, 64], sizes = [16, 32], strides = [1, 1]} : vector<16x96xf32> to vector<16x32xf32>
    %12 = vector.shape_cast %11 : vector<16x32xf32> to vector<2x8x32xf32>
    "tpu.trace_start"() <{level = 10 : i32, message = "bqe,bke->bqk"}> : () -> ()
    %cst_6 = arith.constant dense<0.000000e+00> : vector<2x8x8xf32>
    %13 = tpu.matmul %8, %10, %cst_6 {dimension_numbers = #tpu.dot_dimension_numbers<[2], [2], [1], [1], [0, 0, 0, 1, 1, 1], [0], [0]>} : vector<2x8x32xf32>, vector<2x8x32xf32>, vector<2x8x8xf32> -> vector<2x8x8xf32>
    "tpu.trace_stop"() : () -> ()
    %cst_7 = arith.constant dense<0xFF800000> : vector<2x8xf32>
    %14 = vector.multi_reduction <maximumf>, %13, %cst_7 [2] : vector<2x8x8xf32> to vector<2x8xf32>
    %15 = vector.shape_cast %14 : vector<2x8xf32> to vector<2x8x1xf32>
    %16 = vector.broadcast %15 : vector<2x8x1xf32> to vector<2x8x8xf32>
    %17 = arith.subf %13, %16 : vector<2x8x8xf32>
    %18 = math.exp %17 : vector<2x8x8xf32>
    %cst_8 = arith.constant dense<0.000000e+00> : vector<2x8xf32>
    %19 = vector.multi_reduction <add>, %18, %cst_8 [2] : vector<2x8x8xf32> to vector<2x8xf32>
    %20 = vector.shape_cast %19 : vector<2x8xf32> to vector<2x8x1xf32>
    %21 = vector.broadcast %20 : vector<2x8x1xf32> to vector<2x8x8xf32>
    %22 = arith.divf %18, %21 : vector<2x8x8xf32>
    "tpu.trace_start"() <{level = 10 : i32, message = "bqk,bke->bqe"}> : () -> ()
    %cst_9 = arith.constant dense<0.000000e+00> : vector<2x8x32xf32>
    %23 = tpu.matmul %22, %12, %cst_9 {dimension_numbers = #tpu.dot_dimension_numbers<[2], [1], [1], [2], [0, 0, 0, 1, 1, 2], [0], [0]>} : vector<2x8x8xf32>, vector<2x8x32xf32>, vector<2x8x32xf32> -> vector<2x8x32xf32>
    "tpu.trace_stop"() : () -> ()
    %c0_10 = arith.constant 0 : index
    %c0_11 = arith.constant 0 : index
    %c0_12 = arith.constant 0 : index
    %24 = vector.load %arg3[%c0_10, %c0_11, %c0_12] : memref<2x8x32xf32, #tpu.memory_space<vmem>>, vector<2x8x32xf32>
    tpu.vector_store %arg3[%c0_10, %c0_11, %c0_12], %23 {strides = array<i32>} : memref<2x8x32xf32, #tpu.memory_space<vmem>>, vector<2x8x32xf32>,
    return
  }
}

</mosaic_0001>

<llo_original>
// kernel: tpu_custom_call.1
$region0: #{tpu_custom_call.1}
  #allocation0 [shape = 'u32[]', space=smem, size = 0x4, offset = 0x4, fixed_abs, tag = 'smem constant byte address 0x4 - core index']
  #allocation1 [shape = 'u32[144,128]{1,0:T(1,128)}', space=vmem, size = 0x12000, scoped, tag = 'internal scratch']
  %s0 = inlined_call_operand.hbm [shape: f32[2,8,32], index: 0, kind: input, shape index: {}]
  %s1 = inlined_call_operand.hbm [shape: f32[32,96], index: 1, kind: input, shape index: {}]
  %s2 = inlined_call_operand.vmem [shape: f32[1,96], index: 2, kind: input, shape index: {}]
  %s3 = inlined_call_operand.hbm [shape: f32[2,8,32], index: 3, kind: output, shape index: {}]
  %s4 = sld [smem:[#allocation0]]
  $region30: #{tpu_custom_call.1} parent=0
    _
  %s6 = ssub.s32 1, %s4
  %s7 = scalar_select 0, %s6, %s4
  $region1: #{tpu_custom_call.1} parent=0
    #allocation2 [shape = 'u8[8192]{0}', space=vmem, size = 0x2000, scoped, tag = 'input window, operand 0, single buffered']
    #allocation3 [shape = 's32[1]{0}', space=sflag, size = 0x4, scoped, tag = 'scoped memory for tpu_custom_call.1']
    #allocation4 [shape = 's32[1]{0}', space=sflag, size = 0x4, scoped, tag = 'scoped memory for tpu_custom_call.1']
    #allocation5 [shape = 'u8[16384]{0}', space=vmem, size = 0x4000, scoped, tag = 'input window, operand 1, single buffered']
    #allocation6 [shape = 's32[1]{0}', space=sflag, size = 0x4, scoped, tag = 'scoped memory for tpu_custom_call.1']
    #allocation7 [shape = 'u8[8192]{0}', space=vmem, size = 0x2000, scoped, tag = 'output window, operand 0, single buffered']
    %8 = vsyncpa [#allocation3], 0
    %9 = vsyncpa [#allocation6], 0
    %10 = vsyncpa [#allocation4], 0
    // Predicated region
    $region2: #{tpu_custom_call.1} parent=1 // pred_check
      _
    $region3: #{tpu_custom_call.1} parent=1 // pred_check_branch
      %12 = sbr.rel (0) target = $region5
    $region4: #{tpu_custom_call.1} parent=1 // pred_region
      %s14 = ssub.s32 256, 256
      %15 = vsyncadd [#allocation3], %s14
      %s16 = sshll.u32 [#allocation2], 4
      %s17 = int_to_ptr.vmem [resolvable:$true] %s16
      %22 = dma.hbm_to_vmem [thread:$0]  %s0, 256, %s17, [#allocation3], 128, 128, 8
    $region5: #{tpu_custom_call.1} parent=1 // pred_fallthru
      _
    // Predicated region
    $region6: #{tpu_custom_call.1} parent=1 // pred_check
      _
    $region7: #{tpu_custom_call.1} parent=1 // pred_check_branch
      %24 = sbr.rel (0) target = $region9
    $region8: #{tpu_custom_call.1} parent=1 // pred_region
      %s26 = ssub.s32 512, 512
      %27 = vsyncadd [#allocation6], %s26
      %s28 = sshll.u32 [#allocation5], 4
      %s29 = int_to_ptr.vmem [resolvable:$true] %s28
      %34 = dma.hbm_to_vmem [thread:$0]  %s1, 512, %s29, [#allocation6], 128, 128, 8
    $region9: #{tpu_custom_call.1} parent=1 // pred_fallthru
      _
    // Predicated region
    $region10: #{tpu_custom_call.1} parent=1 // pred_check
      _
    $region11: #{tpu_custom_call.1} parent=1 // pred_check_branch
      %36 = sbr.rel (0) target = $region13
    $region12: #{tpu_custom_call.1} parent=1 // pred_region
      _
    $region13: #{tpu_custom_call.1} parent=1 // pred_fallthru
      _
    // Predicated region
    $region14: #{tpu_custom_call.1} parent=1 // pred_check
      _
    $region15: #{tpu_custom_call.1} parent=1 // pred_check_branch
      %38 = sbr.rel (0) target = $region17
    $region16: #{tpu_custom_call.1} parent=1 // pred_region
      %39 = dma.done [#allocation3], 256
    $region17: #{tpu_custom_call.1} parent=1 // pred_fallthru
      _
    // Predicated region
    $region18: #{tpu_custom_call.1} parent=1 // pred_check
      _
    $region19: #{tpu_custom_call.1} parent=1 // pred_check_branch
      %41 = sbr.rel (0) target = $region21
    $region20: #{tpu_custom_call.1} parent=1 // pred_region
      %42 = dma.done [#allocation6], 512
    $region21: #{tpu_custom_call.1} parent=1 // pred_fallthru
      _
    %v43 = vld [vmem:[#allocation2] sm:$0xff]
    %v44 = vld [vmem:[#allocation2 + $0x8] sm:$0xff]
    %v45 = vld [vmem:[#allocation5] sm:$0xff]
    %v46 = vld [vmem:[#allocation5 + $0x8] sm:$0xff]
    %v47 = vld [vmem:[#allocation5 + $0x10] sm:$0xff]
    %v48 = vld [vmem:[#allocation5 + $0x18] sm:$0xff]
    %v49 = vld [vmem:[%s2] sm:$0x1]
    %v51 = vlaneseq
    %v52 = vshrl.u32 %v51, 7
    %v53 = vsub.s32 0, %v52
    %v54 = vrot.slane %v49, %v53
    %vm56 = vcmask 261120
    %v58 = vsel %vm56, %v43, 0
    %v61 = vsel %vm56, %v44, 0
    %63 = vmatprep.subr.mxu0 0.0
    %64 = vmatpush1.msra.mxu0 0.0
    %65 = vmatprep.subr.mxu0 0.0
    %66 = vmatpush1.msra.mxu0 0.0
    %67 = vmatprep.subr.mxu0 0.0
    %68 = vmatpush1.msra.mxu0 0.0
    %69 = vmatprep.subr.mxu0 0.0
    %70 = vmatpush1.msra.mxu0 0.0
    %71 = vmatprep.subr.mxu0 0.0
    %72 = vmatpush1.msra.mxu0 0.0
    %73 = vmatprep.subr.mxu0 0.0
    %74 = vmatpush1.msra.mxu0 0.0
    %75 = vmatprep.subr.mxu0 0.0
    %76 = vmatpush1.msra.mxu0 0.0
    %77 = vmatprep.subr.mxu0 0.0
    %78 = vmatpush1.msra.mxu0 0.0
    %79 = vmatprep.subr.mxu0 0.0
    %80 = vmatpush1.msra.mxu0 0.0
    %81 = vmatprep.subr.mxu0 0.0
    %82 = vmatpush1.msra.mxu0 0.0
    %83 = vmatprep.subr.mxu0 0.0
    %84 = vmatpush1.msra.mxu0 0.0
    %85 = vmatprep.subr.mxu0 0.0
    %86 = vmatpush1.msra.mxu0 0.0
    %87 = vmatprep.subr.mxu0 0.0
    %88 = vmatpush1.msra.mxu0 %v48
    %89 = vmatprep.subr.mxu0 0.0
    %90 = vmatpush1.msra.mxu0 %v47
    %91 = vmatprep.subr.mxu0 0.0
    %92 = vmatpush1.msra.mxu0 %v46
    %93 = vmatprep.subr.mxu0 0.0
    %94 = vmatpush1.msra.mxu0 %v45
    %95 = vmatprep.subr.mxu0 0.0
    %96 = vmatpush2.msra.mxu0 0.0
    %97 = vmatprep.subr.mxu0 0.0
    %98 = vmatpush2.msra.mxu0 0.0
    %99 = vmatprep.subr.mxu0 0.0
    %100 = vmatpush2.msra.mxu0 0.0
    %101 = vmatprep.subr.mxu0 0.0
    %102 = vmatpush2.msra.mxu0 0.0
    %103 = vmatprep.subr.mxu0 0.0
    %104 = vmatpush2.msra.mxu0 0.0
    %105 = vmatprep.subr.mxu0 0.0
    %106 = vmatpush2.msra.mxu0 0.0
    %107 = vmatprep.subr.mxu0 0.0
    %108 = vmatpush2.msra.mxu0 0.0
    %109 = vmatprep.subr.mxu0 0.0
    %110 = vmatpush2.msra.mxu0 0.0
    %111 = vmatprep.subr.mxu0 0.0
    %112 = vmatpush2.msra.mxu0 0.0
    %113 = vmatprep.subr.mxu0 0.0
    %114 = vmatpush2.msra.mxu0 0.0
    %115 = vmatprep.subr.mxu0 0.0
    %116 = vmatpush2.msra.mxu0 0.0
    %117 = vmatprep.subr.mxu0 0.0
    %118 = vmatpush2.msra.mxu0 0.0
    %119 = vmatprep.subr.mxu0 0.0
    %120 = vmatpush2.msra.mxu0 0.0
    %121 = vmatprep.subr.mxu0 0.0
    %122 = vmatpush2.msra.mxu0 0.0
    %123 = vmatprep.subr.mxu0 0.0
    %124 = vmatpush2.msra.mxu0 0.0
    %125 = vmatprep.subr.mxu0 0.0
    %126 = vmatpush2.msra.mxu0 0.0
    %127 = vmatprep.mubr.f32.mxu0 0.0
    %128 = vmatmul.mubr.f32.gmra.mxu0 %v58
    %v129 = vpop.f32.mrf.mxu0
    %v130 = vadd.f32 %v54, %v129
    %v131 = vpop.f32.mrf.mxu0
    %132 = vmatprep.mubr.f32.mxu0 0.0
    %133 = vmatmul.mubr.f32.gmra.mxu0 %v61
    %v134 = vpop.f32.mrf.mxu0
    %v135 = vadd.f32 %v54, %v134
    %v136 = vpop.f32.mrf.mxu0
    %137 = vdwg.mxu0
    %139 = vrot.lane.b32.xlu0 %v130, 96
    %v140 = vpop.permute.xlu0 %139
    %v141 = vsel %vm56, %v130, 0
    %v143 = vsel %vm56, %v140, 0
    %145 = vmatprep.subr.mxu0 0.0
    %146 = vmatpush1.xpose.msra.mxu0 0.0
    %147 = vmatprep.subr.mxu0 0.0
    %148 = vmatpush1.xpose.msra.mxu0 0.0
    %149 = vmatprep.subr.mxu0 0.0
    %150 = vmatpush1.xpose.msra.mxu0 0.0
    %151 = vmatprep.subr.mxu0 0.0
    %152 = vmatpush1.xpose.msra.mxu0 0.0
    %153 = vmatprep.subr.mxu0 0.0
    %154 = vmatpush1.xpose.msra.mxu0 0.0
    %155 = vmatprep.subr.mxu0 0.0
    %156 = vmatpush1.xpose.msra.mxu0 0.0
    %157 = vmatprep.subr.mxu0 0.0
    %158 = vmatpush1.xpose.msra.mxu0 0.0
    %159 = vmatprep.subr.mxu0 0.0
    %160 = vmatpush1.xpose.msra.mxu0 0.0
    %161 = vmatprep.subr.mxu0 0.0
    %162 = vmatpush1.xpose.msra.mxu0 0.0
    %163 = vmatprep.subr.mxu0 0.0
    %164 = vmatpush1.xpose.msra.mxu0 0.0
    %165 = vmatprep.subr.mxu0 0.0
    %166 = vmatpush1.xpose.msra.mxu0 0.0
    %167 = vmatprep.subr.mxu0 0.0
    %168 = vmatpush1.xpose.msra.mxu0 0.0
    %169 = vmatprep.subr.mxu0 0.0
    %170 = vmatpush1.xpose.msra.mxu0 0.0
    %171 = vmatprep.subr.mxu0 0.0
    %172 = vmatpush1.xpose.msra.mxu0 0.0
    %173 = vmatprep.subr.mxu0 0.0
    %174 = vmatpush1.xpose.msra.mxu0 0.0
    %175 = vmatprep.subr.mxu0 0.0
    %176 = vmatpush1.xpose.msra.mxu0 %v143
    %177 = vmatprep.subr.mxu0 0.0
    %178 = vmatpush2.xpose.msra.mxu0 0.0
    %179 = vmatprep.subr.mxu0 0.0
    %180 = vmatpush2.xpose.msra.mxu0 0.0
    %181 = vmatprep.subr.mxu0 0.0
    %182 = vmatpush2.xpose.msra.mxu0 0.0
    %183 = vmatprep.subr.mxu0 0.0
    %184 = vmatpush2.xpose.msra.mxu0 0.0
    %185 = vmatprep.subr.mxu0 0.0
    %186 = vmatpush2.xpose.msra.mxu0 0.0
    %187 = vmatprep.subr.mxu0 0.0
    %188 = vmatpush2.xpose.msra.mxu0 0.0
    %189 = vmatprep.subr.mxu0 0.0
    %190 = vmatpush2.xpose.msra.mxu0 0.0
    %191 = vmatprep.subr.mxu0 0.0
    %192 = vmatpush2.xpose.msra.mxu0 0.0
    %193 = vmatprep.subr.mxu0 0.0
    %194 = vmatpush2.xpose.msra.mxu0 0.0
    %195 = vmatprep.subr.mxu0 0.0
    %196 = vmatpush2.xpose.msra.mxu0 0.0
    %197 = vmatprep.subr.mxu0 0.0
    %198 = vmatpush2.xpose.msra.mxu0 0.0
    %199 = vmatprep.subr.mxu0 0.0
    %200 = vmatpush2.xpose.msra.mxu0 0.0
    %201 = vmatprep.subr.mxu0 0.0
    %202 = vmatpush2.xpose.msra.mxu0 0.0
    %203 = vmatprep.subr.mxu0 0.0
    %204 = vmatpush2.xpose.msra.mxu0 0.0
    %205 = vmatprep.subr.mxu0 0.0
    %206 = vmatpush2.xpose.msra.mxu0 0.0
    %207 = vmatprep.subr.mxu0 0.0
    %208 = vmatpush2.xpose.msra.mxu0 0.0
    %209 = vmatprep.mubr.f32.mxu0 0.0
    %210 = vmatmul.mubr.f32.gmra.mxu0 %v141
    %v211 = vpop.f32.mrf.mxu0
    %v212 = vadd.f32 0.0, %v211
    %v213 = vpop.f32.mrf.mxu0
    %214 = vdwg.mxu0
    %216 = vrot.lane.b32.xlu0 %v135, 96
    %v217 = vpop.permute.xlu0 %216
    %v218 = vsel %vm56, %v135, 0
    %v220 = vsel %vm56, %v217, 0
    %222 = vmatprep.subr.mxu0 0.0
    %223 = vmatpush1.xpose.msra.mxu0 0.0
    %224 = vmatprep.subr.mxu0 0.0
    %225 = vmatpush1.xpose.msra.mxu0 0.0
    %226 = vmatprep.subr.mxu0 0.0
    %227 = vmatpush1.xpose.msra.mxu0 0.0
    %228 = vmatprep.subr.mxu0 0.0
    %229 = vmatpush1.xpose.msra.mxu0 0.0
    %230 = vmatprep.subr.mxu0 0.0
    %231 = vmatpush1.xpose.msra.mxu0 0.0
    %232 = vmatprep.subr.mxu0 0.0
    %233 = vmatpush1.xpose.msra.mxu0 0.0
    %234 = vmatprep.subr.mxu0 0.0
    %235 = vmatpush1.xpose.msra.mxu0 0.0
    %236 = vmatprep.subr.mxu0 0.0
    %237 = vmatpush1.xpose.msra.mxu0 0.0
    %238 = vmatprep.subr.mxu0 0.0
    %239 = vmatpush1.xpose.msra.mxu0 0.0
    %240 = vmatprep.subr.mxu0 0.0
    %241 = vmatpush1.xpose.msra.mxu0 0.0
    %242 = vmatprep.subr.mxu0 0.0
    %243 = vmatpush1.xpose.msra.mxu0 0.0
    %244 = vmatprep.subr.mxu0 0.0
    %245 = vmatpush1.xpose.msra.mxu0 0.0
    %246 = vmatprep.subr.mxu0 0.0
    %247 = vmatpush1.xpose.msra.mxu0 0.0
    %248 = vmatprep.subr.mxu0 0.0
    %249 = vmatpush1.xpose.msra.mxu0 0.0
    %250 = vmatprep.subr.mxu0 0.0
    %251 = vmatpush1.xpose.msra.mxu0 0.0
    %252 = vmatprep.subr.mxu0 0.0
    %253 = vmatpush1.xpose.msra.mxu0 %v220
    %254 = vmatprep.subr.mxu0 0.0
    %255 = vmatpush2.xpose.msra.mxu0 0.0
    %256 = vmatprep.subr.mxu0 0.0
    %257 = vmatpush2.xpose.msra.mxu0 0.0
    %258 = vmatprep.subr.mxu0 0.0
    %259 = vmatpush2.xpose.msra.mxu0 0.0
    %260 = vmatprep.subr.mxu0 0.0
    %261 = vmatpush2.xpose.msra.mxu0 0.0
    %262 = vmatprep.subr.mxu0 0.0
    %263 = vmatpush2.xpose.msra.mxu0 0.0
    %264 = vmatprep.subr.mxu0 0.0
    %265 = vmatpush2.xpose.msra.mxu0 0.0
    %266 = vmatprep.subr.mxu0 0.0
    %267 = vmatpush2.xpose.msra.mxu0 0.0
    %268 = vmatprep.subr.mxu0 0.0
    %269 = vmatpush2.xpose.msra.mxu0 0.0
    %270 = vmatprep.subr.mxu0 0.0
    %271 = vmatpush2.xpose.msra.mxu0 0.0
    %272 = vmatprep.subr.mxu0 0.0
    %273 = vmatpush2.xpose.msra.mxu0 0.0
    %274 = vmatprep.subr.mxu0 0.0
    %275 = vmatpush2.xpose.msra.mxu0 0.0
    %276 = vmatprep.subr.mxu0 0.0
    %277 = vmatpush2.xpose.msra.mxu0 0.0
    %278 = vmatprep.subr.mxu0 0.0
    %279 = vmatpush2.xpose.msra.mxu0 0.0
    %280 = vmatprep.subr.mxu0 0.0
    %281 = vmatpush2.xpose.msra.mxu0 0.0
    %282 = vmatprep.subr.mxu0 0.0
    %283 = vmatpush2.xpose.msra.mxu0 0.0
    %284 = vmatprep.subr.mxu0 0.0
    %285 = vmatpush2.xpose.msra.mxu0 0.0
    %286 = vmatprep.mubr.f32.mxu0 0.0
    %287 = vmatmul.mubr.f32.gmra.mxu0 %v218
    %v288 = vpop.f32.mrf.mxu0
    %v289 = vadd.f32 0.0, %v288
    %v290 = vpop.f32.mrf.mxu0
    %291 = vdwg.mxu0
    %vm292 = vcmask 64512
    %v293 = vsel %vm292, %v212, -inf
    %294 = vmax.xlane.f32.xlu0 %v293
    %v295 = vpop.xlane.xlu0 %294
    %v296 = vsel %vm292, %v289, -inf
    %297 = vmax.xlane.f32.xlu0 %v296
    %v298 = vpop.xlane.xlu0 %297
    %v299 = vsub.f32 %v212, %v295
    %v300 = vsub.f32 %v289, %v298
    %v301 = vmul.f32 %v299, 1.442695
    %v302 = vpow.pop %v301
    %v303 = vmul.f32 %v300, 1.442695
    %v304 = vpow.pop %v303
    %v305 = vsel %vm292, %v302, 0.0
    %306 = vadd.xlane.f32.xlu0 %v305
    %v307 = vpop.xlane.xlu0 %306
    %v308 = vsel %vm292, %v304, 0.0
    %309 = vadd.xlane.f32.xlu0 %v308
    %v310 = vpop.xlane.xlu0 %309
    %v311 = vrcp.pop %v307
    %v312 = vmul.f32 %v302, %v311
    %v313 = vrcp.pop %v310
    %v314 = vmul.f32 %v304, %v313
    %315 = vrot.lane.b32.xlu0 %v130, 64
    %v316 = vpop.permute.xlu0 %315
    %v319 = vsel %vm292, %v312, 0
    %321 = vmatprep.subr.mxu0 0.0
    %322 = vmatpush1.msra.mxu0 0.0
    %323 = vmatprep.subr.mxu0 0.0
    %324 = vmatpush1.msra.mxu0 0.0
    %325 = vmatprep.subr.mxu0 0.0
    %326 = vmatpush1.msra.mxu0 0.0
    %327 = vmatprep.subr.mxu0 0.0
    %328 = vmatpush1.msra.mxu0 0.0
    %329 = vmatprep.subr.mxu0 0.0
    %330 = vmatpush1.msra.mxu0 0.0
    %331 = vmatprep.subr.mxu0 0.0
    %332 = vmatpush1.msra.mxu0 0.0
    %333 = vmatprep.subr.mxu0 0.0
    %334 = vmatpush1.msra.mxu0 0.0
    %335 = vmatprep.subr.mxu0 0.0
    %336 = vmatpush1.msra.mxu0 0.0
    %337 = vmatprep.subr.mxu0 0.0
    %338 = vmatpush1.msra.mxu0 0.0
    %339 = vmatprep.subr.mxu0 0.0
    %340 = vmatpush1.msra.mxu0 0.0
    %341 = vmatprep.subr.mxu0 0.0
    %342 = vmatpush1.msra.mxu0 0.0
    %343 = vmatprep.subr.mxu0 0.0
    %344 = vmatpush1.msra.mxu0 0.0
    %345 = vmatprep.subr.mxu0 0.0
    %346 = vmatpush1.msra.mxu0 0.0
    %347 = vmatprep.subr.mxu0 0.0
    %348 = vmatpush1.msra.mxu0 0.0
    %349 = vmatprep.subr.mxu0 0.0
    %350 = vmatpush1.msra.mxu0 0.0
    %351 = vmatprep.subr.mxu0 0.0
    %352 = vmatpush1.msra.mxu0 %v316
    %353 = vmatprep.subr.mxu0 0.0
    %354 = vmatpush2.msra.mxu0 0.0
    %355 = vmatprep.subr.mxu0 0.0
    %356 = vmatpush2.msra.mxu0 0.0
    %357 = vmatprep.subr.mxu0 0.0
    %358 = vmatpush2.msra.mxu0 0.0
    %359 = vmatprep.subr.mxu0 0.0
    %360 = vmatpush2.msra.mxu0 0.0
    %361 = vmatprep.subr.mxu0 0.0
    %362 = vmatpush2.msra.mxu0 0.0
    %363 = vmatprep.subr.mxu0 0.0
    %364 = vmatpush2.msra.mxu0 0.0
    %365 = vmatprep.subr.mxu0 0.0
    %366 = vmatpush2.msra.mxu0 0.0
    %367 = vmatprep.subr.mxu0 0.0
    %368 = vmatpush2.msra.mxu0 0.0
    %369 = vmatprep.subr.mxu0 0.0
    %370 = vmatpush2.msra.mxu0 0.0
    %371 = vmatprep.subr.mxu0 0.0
    %372 = vmatpush2.msra.mxu0 0.0
    %373 = vmatprep.subr.mxu0 0.0
    %374 = vmatpush2.msra.mxu0 0.0
    %375 = vmatprep.subr.mxu0 0.0
    %376 = vmatpush2.msra.mxu0 0.0
    %377 = vmatprep.subr.mxu0 0.0
    %378 = vmatpush2.msra.mxu0 0.0
    %379 = vmatprep.subr.mxu0 0.0
    %380 = vmatpush2.msra.mxu0 0.0
    %381 = vmatprep.subr.mxu0 0.0
    %382 = vmatpush2.msra.mxu0 0.0
    %383 = vmatprep.subr.mxu0 0.0
    %384 = vmatpush2.msra.mxu0 0.0
    %385 = vmatprep.mubr.f32.mxu0 0.0
    %386 = vmatmul.mubr.f32.gmra.mxu0 %v319
    %v387 = vpop.f32.mrf.mxu0
    %v388 = vadd.f32 0.0, %v387
    %v389 = vpop.f32.mrf.mxu0
    %390 = vdwg.mxu0
    %391 = vrot.lane.b32.xlu0 %v135, 64
    %v392 = vpop.permute.xlu0 %391
    %v395 = vsel %vm292, %v314, 0
    %397 = vmatprep.subr.mxu0 0.0
    %398 = vmatpush1.msra.mxu0 0.0
    %399 = vmatprep.subr.mxu0 0.0
    %400 = vmatpush1.msra.mxu0 0.0
    %401 = vmatprep.subr.mxu0 0.0
    %402 = vmatpush1.msra.mxu0 0.0
    %403 = vmatprep.subr.mxu0 0.0
    %404 = vmatpush1.msra.mxu0 0.0
    %405 = vmatprep.subr.mxu0 0.0
    %406 = vmatpush1.msra.mxu0 0.0
    %407 = vmatprep.subr.mxu0 0.0
    %408 = vmatpush1.msra.mxu0 0.0
    %409 = vmatprep.subr.mxu0 0.0
    %410 = vmatpush1.msra.mxu0 0.0
    %411 = vmatprep.subr.mxu0 0.0
    %412 = vmatpush1.msra.mxu0 0.0
    %413 = vmatprep.subr.mxu0 0.0
    %414 = vmatpush1.msra.mxu0 0.0
    %415 = vmatprep.subr.mxu0 0.0
    %416 = vmatpush1.msra.mxu0 0.0
    %417 = vmatprep.subr.mxu0 0.0
    %418 = vmatpush1.msra.mxu0 0.0
    %419 = vmatprep.subr.mxu0 0.0
    %420 = vmatpush1.msra.mxu0 0.0
    %421 = vmatprep.subr.mxu0 0.0
    %422 = vmatpush1.msra.mxu0 0.0
    %423 = vmatprep.subr.mxu0 0.0
    %424 = vmatpush1.msra.mxu0 0.0
    %425 = vmatprep.subr.mxu0 0.0
    %426 = vmatpush1.msra.mxu0 0.0
    %427 = vmatprep.subr.mxu0 0.0
    %428 = vmatpush1.msra.mxu0 %v392
    %429 = vmatprep.subr.mxu0 0.0
    %430 = vmatpush2.msra.mxu0 0.0
    %431 = vmatprep.subr.mxu0 0.0
    %432 = vmatpush2.msra.mxu0 0.0
    %433 = vmatprep.subr.mxu0 0.0
    %434 = vmatpush2.msra.mxu0 0.0
    %435 = vmatprep.subr.mxu0 0.0
    %436 = vmatpush2.msra.mxu0 0.0
    %437 = vmatprep.subr.mxu0 0.0
    %438 = vmatpush2.msra.mxu0 0.0
    %439 = vmatprep.subr.mxu0 0.0
    %440 = vmatpush2.msra.mxu0 0.0
    %441 = vmatprep.subr.mxu0 0.0
    %442 = vmatpush2.msra.mxu0 0.0
    %443 = vmatprep.subr.mxu0 0.0
    %444 = vmatpush2.msra.mxu0 0.0
    %445 = vmatprep.subr.mxu0 0.0
    %446 = vmatpush2.msra.mxu0 0.0
    %447 = vmatprep.subr.mxu0 0.0
    %448 = vmatpush2.msra.mxu0 0.0
    %449 = vmatprep.subr.mxu0 0.0
    %450 = vmatpush2.msra.mxu0 0.0
    %451 = vmatprep.subr.mxu0 0.0
    %452 = vmatpush2.msra.mxu0 0.0
    %453 = vmatprep.subr.mxu0 0.0
    %454 = vmatpush2.msra.mxu0 0.0
    %455 = vmatprep.subr.mxu0 0.0
    %456 = vmatpush2.msra.mxu0 0.0
    %457 = vmatprep.subr.mxu0 0.0
    %458 = vmatpush2.msra.mxu0 0.0
    %459 = vmatprep.subr.mxu0 0.0
    %460 = vmatpush2.msra.mxu0 0.0
    %461 = vmatprep.mubr.f32.mxu0 0.0
    %462 = vmatmul.mubr.f32.gmra.mxu0 %v395
    %v463 = vpop.f32.mrf.mxu0
    %v464 = vadd.f32 0.0, %v463
    %v465 = vpop.f32.mrf.mxu0
    %466 = vdwg.mxu0
    %467 = vst.msk [vmem:[#allocation7] sm:$0xff] %vm56, %v388
    %468 = vst.msk [vmem:[#allocation7 + $0x8] sm:$0xff] %vm56, %v464
    // Predicated region
    $region22: #{tpu_custom_call.1} parent=1 // pred_check
      _
    $region23: #{tpu_custom_call.1} parent=1 // pred_check_branch
      %470 = sbr.rel (0) target = $region25
    $region24: #{tpu_custom_call.1} parent=1 // pred_region
      %s472 = ssub.s32 256, 256
      %473 = vsyncadd [#allocation4], %s472
      %s474 = sshll.u32 [#allocation7], 4
      %s475 = int_to_ptr.vmem [resolvable:$true] %s474
      %480 = dma.vmem_to_hbm [thread:$0]  %s475, 256, %s3, [#allocation4], 128, 128, 8
    $region25: #{tpu_custom_call.1} parent=1 // pred_fallthru
      _
    // Predicated region
    $region26: #{tpu_custom_call.1} parent=1 // pred_check
      _
    $region27: #{tpu_custom_call.1} parent=1 // pred_check_branch
      %482 = sbr.rel (0) target = $region29
    $region28: #{tpu_custom_call.1} parent=1 // pred_region
      %483 = dma.done [#allocation4], 256
    $region29: #{tpu_custom_call.1} parent=1 // pred_fallthru
      _
    %484 = vsyncpa [#allocation3], 1
    %485 = vsyncpa [#allocation6], 1
    %486 = vsyncpa [#allocation4], 1

</llo_original>
